<compile_context>
chip_gen: v5e
topology: v5e:2x2
jax: 0.10.0
libtpu: 0.0.40
codegen_flags: <defaults>
</compile_context>

<pallas_src>
import jax
import jax.numpy as jnp
import numpy as np
from jax.experimental import pallas as pl
from jax.experimental.pallas import tpu as pltpu


_BUDGET_BYTES = 20 * 1024 * 1024   # double-buffered working-set cap (v7x-safe)


def _silu(v):
    return v * jax.nn.sigmoid(v)


def _make_fuse_kernel(ev_reps):
    """Kernel writing one (1, C_out, T) tile of the fused UNet input.

    The fused tile is built in registers with a single sublane concatenate and
    written with ONE unmasked lane-dense store (no sublane-masked partial
    stores).  ev_reps > 1 means the event block covers only W lanes and is
    repeated in-kernel to span the TH-row tile.
    """
    def kernel(x_ref, mix_ref, tb_ref, ev_ref, out_ref):
        P = tb_ref.shape[1]
        T = x_ref.shape[2]
        x_blk = x_ref[0]                                     # (C, T)
        mix_blk = mix_ref[0]                                 # (C, T)
        tb_blk = jnp.broadcast_to(tb_ref[0], (P, T))         # (P, T)  lane bcast
        ev_blk = ev_ref[0]                                   # (P16, W or T)
        if ev_reps > 1:
            ev_blk = jnp.concatenate([ev_blk] * ev_reps, axis=-1)   # (P16, T)
        fused = jnp.concatenate([x_blk, mix_blk, tb_blk, ev_blk], axis=0)
        out_ref[0] = fused.astype(out_ref.dtype)
    return kernel


def diff_tse_forward(x, t, mixture, params, cls=None, timbre=None,
                     timbre_feature=None, event=None,
                     target_lanes=32768, out_dtype=None, _force_flat=False):
    """DiffTSE forward (concat fusion). NCHW in / NCHW out.

    TODO(synk): t / cls / timbre feed only the (unavailable) UNet2DModel /
    TimbreBlock; the fused UNet input tensor is returned instead.
    """
    del t, cls, timbre
    B, C, H, W = x.shape
    out_dtype = x.dtype if out_dtype is None else out_dtype

    # ---- tiny MLPs hoisted to XLA (MXU-pathological inside the kernel) -----
    h = _silu(timbre_feature @ params["fw1"] + params["fb1"][0])
    tb = h @ params["fw2"] + params["fb2"][0]                       # (B, P)
    P = tb.shape[1]

    e = event[..., None]                                            # (B, W, 1)
    he = _silu(e @ params["pw1"] + params["pb1"][0])
    z = he @ params["pw2"] + params["pb2"][0]                       # (B, W, P16)
    z = jnp.transpose(z, (0, 2, 1))                                 # (B, P16, W)
    P16 = z.shape[1]

    C_out = 2 * C + P + P16
    HW = H * W
    out_itemsize = jnp.dtype(out_dtype).itemsize
    bytes_per_lane = 4 * (2 * C + P16) + out_itemsize * C_out
    t_cap = max(128, (_BUDGET_BYTES // (2 * bytes_per_lane)) // 128 * 128)
    want = min(int(target_lanes), t_cap)

    # ---- layout plumbing: free reshapes of contiguous NCHW (no transposes) -
    x3 = x.reshape(B, C, HW)
    mix3 = mixture.reshape(B, C, HW)
    tb3 = tb[:, :, None]                                            # (B, P, 1)

    # ---- tiling choice ------------------------------------------------------
    row_cands = [th for th in range(1, H + 1)
                 if H % th == 0 and ((th * W) % 128 == 0 or th * W == HW)]
    if B == 1:
        multi = [th for th in row_cands if H // th >= 2]
        if multi:                      # keep >=2 grid steps for the 2 TCs
            row_cands = multi
    geq = [th for th in row_cands if th * W >= min(want, HW)]
    TH = min(geq) if geq else max(row_cands)
    T_row = TH * W
    row_ok = (not _force_flat
              and 2 * bytes_per_lane * T_row <= int(1.5 * _BUDGET_BYTES)
              and not (B == 1 and H // TH == 1 and HW >= 256))

    if row_ok:
        T = T_row
        n_s = H // TH
        out_flat = HW
        x_in, mix_in = x3, mix3
        if W % 128 == 0:
            # pass (B, P16, W); repeat TH times inside the kernel (no extra HBM)
            ev_in = z
            ev_spec = pl.BlockSpec((1, P16, W), lambda b, s: (b, 0, 0))
            ev_reps = TH
        else:
            # one tile's worth, reused (constant-in-s index_map) across tiles
            ev_in = jnp.tile(z, (1, 1, TH))                          # (B, P16, T)
            ev_spec = pl.BlockSpec((1, P16, T), lambda b, s: (b, 0, 0))
            ev_reps = 1
    else:
        # flat fallback: pad the flattened spatial axis to a multiple of 128
        HW_pad = ((HW + 127) // 128) * 128
        T = min(want, HW_pad)
        if B == 1 and HW_pad >= 256:
            T = min(T, max(128, (HW_pad // 2) // 128 * 128))
        T = max(T, 128)
        n_s = -(-HW_pad // T)
        out_flat = n_s * T
        pad = out_flat - HW
        x_in = jnp.pad(x3, ((0, 0), (0, 0), (0, pad)))
        mix_in = jnp.pad(mix3, ((0, 0), (0, 0), (0, pad)))
        ev_full = jnp.tile(z, (1, 1, H))                             # (B, P16, HW)
        ev_in = jnp.pad(ev_full, ((0, 0), (0, 0), (0, pad)))
        ev_spec = pl.BlockSpec((1, P16, T), lambda b, s: (b, 0, s))
        ev_reps = 1

    # ---- compiler params / cost hint ---------------------------------------
    tile_bytes = (4 * 2 * C * T + 4 * P16 * (W if ev_reps > 1 else T)
                  + out_itemsize * C_out * T)
    vmem_limit = int(min(64 * 1024 * 1024,
                         max(32 * 1024 * 1024, 4 * tile_bytes)))
    bytes_accessed = int(4 * B * (2 * C * HW + P + P16 * W)
                         + out_itemsize * B * C_out * out_flat)

    out3 = pl.pallas_call(
        _make_fuse_kernel(ev_reps),
        out_shape=jax.ShapeDtypeStruct((B, C_out, out_flat), out_dtype),
        grid=(B, n_s),
        in_specs=[
            pl.BlockSpec((1, C, T), lambda b, s: (b, 0, s)),         # x
            pl.BlockSpec((1, C, T), lambda b, s: (b, 0, s)),         # mixture
            pl.BlockSpec((1, P, 1), lambda b, s: (b, 0, 0)),         # timbre emb
            ev_spec,                                                 # event ppg
        ],
        out_specs=pl.BlockSpec((1, C_out, T), lambda b, s: (b, 0, s)),
        compiler_params=pltpu.CompilerParams(
            dimension_semantics=("parallel", "parallel"),
            vmem_limit_bytes=vmem_limit),
        cost_estimate=pl.CostEstimate(
            flops=0, transcendentals=0, bytes_accessed=bytes_accessed),
    )(x_in, mix_in, tb3, ev_in)

    if out_flat != HW:
        out3 = out3[:, :, :HW]
    return out3.reshape(B, C_out, H, W)


def reference_forward(x, mixture, timbre_feature, event, params):
    """Pure-JAX (NCHW) reference of the visible DiffTSE forward."""
    silu = lambda v: v * jax.nn.sigmoid(v)
    h = silu(timbre_feature @ params["fw1"] + params["fb1"][0])
    tb = h @ params["fw2"] + params["fb2"][0]                       # (B, P)
    B, C, H, W = x.shape
    P = tb.shape[1]
    timbre_b = jnp.broadcast_to(tb[:, :, None, None], (B, P, H, W))
    e = event[..., None]                                            # (B, W, 1)
    he = silu(e @ params["pw1"] + params["pb1"][0])
    z = he @ params["pw2"] + params["pb2"][0]                       # (B, W, P16)
    P16 = z.shape[-1]
    z = jnp.transpose(z, (0, 2, 1))[:, :, None, :]                  # (B, P16, 1, W)
    z = jnp.broadcast_to(z, (B, P16, H, W))
    return jnp.concatenate([x, mixture, timbre_b, z], axis=1)


def _make_inputs(key, B, C, H, W, P, Dtf):
    P16 = P // 16
    ks = jax.random.split(key, 12)
    params = {
        "fw1": jax.random.normal(ks[0], (Dtf, 2 * P), jnp.float32) * 0.1,
        "fb1": jax.random.normal(ks[1], (1, 2 * P), jnp.float32) * 0.1,
        "fw2": jax.random.normal(ks[2], (2 * P, P), jnp.float32) * 0.1,
        "fb2": jax.random.normal(ks[3], (1, P), jnp.float32) * 0.1,
        "pw1": jax.random.normal(ks[4], (1, P16), jnp.float32) * 0.1,
        "pb1": jax.random.normal(ks[5], (1, P16), jnp.float32) * 0.1,
        "pw2": jax.random.normal(ks[6], (P16, P16), jnp.float32) * 0.1,
        "pb2": jax.random.normal(ks[7], (1, P16), jnp.float32) * 0.1,
    }
    x = jax.random.normal(ks[8], (B, C, H, W), jnp.float32)
    mixture = jax.random.normal(ks[9], (B, C, H, W), jnp.float32)
    timbre_feature = jax.random.normal(ks[10], (B, Dtf), jnp.float32)
    event = jax.random.normal(ks[11], (B, W), jnp.float32)
    return params, x, mixture, timbre_feature, event


if __name__ == "__main__":
    P, Dtf = 32, 16                  # pre_hidden, timbre_feature_dim
    P16 = P // 16
    key = jax.random.PRNGKey(0)

    # (B, C, H, W) cases:
    #  1) wrapper-tiled event path (W not lane-aligned), row tiling
    #  2) in-kernel event repeat path (W % 128 == 0), row tiling
    #  3) flat-padded fallback (odd W, B==1 -> keeps >=2 grid steps)
    cases = [(2, 4, 16, 16), (2, 4, 16, 128), (1, 4, 12, 25)]

    for i, (B, C, H, W) in enumerate(cases):
        params, x, mixture, timbre_feature, event = _make_inputs(
            jax.random.fold_in(key, i), B, C, H, W, P, Dtf)
        t = jnp.zeros((B,), jnp.int32)   # timestep (unused; see TODO above)
        ref = reference_forward(x, mixture, timbre_feature, event, params)
        out = diff_tse_forward(x, t, mixture, params,
                               timbre_feature=timbre_feature, event=event)
        out = jax.block_until_ready(out)
        assert out.shape == (B, 2 * C + P + P16, H, W), out.shape
        np.testing.assert_allclose(np.asarray(out), np.asarray(ref),
                                   rtol=2e-3, atol=2e-3)

    print("KERNEL_OK")
</pallas_src>

<mosaic_0001>
module attributes {stable_mosaic.version = 11 : i64} {
  func.func @kernel(%arg0: i32, %arg1: i32, %arg2: memref<1x4x256xf32, #tpu.memory_space<vmem>>, %arg3: memref<1x4x256xf32, #tpu.memory_space<vmem>>, %arg4: memref<1x32x1xf32, #tpu.memory_space<vmem>>, %arg5: memref<1x2x256xf32, #tpu.memory_space<vmem>>, %arg6: memref<1x42x256xf32, #tpu.memory_space<vmem>>) attributes {dimension_semantics = [#tpu.dimension_semantics<parallel>, #tpu.dimension_semantics<parallel>], iteration_bounds = array<i64: 2, 1>, scalar_prefetch = 0 : i64, scratch_operands = 0 : i64, tpu.core_type = #tpu.core_type<tc>, window_params = [{transform_indices = @transform_0, window_bounds = array<i64: 1, 4, 256>}, {transform_indices = @transform_1, window_bounds = array<i64: 1, 4, 256>}, {transform_indices = @transform_2, window_bounds = array<i64: 1, 32, 1>}, {transform_indices = @transform_3, window_bounds = array<i64: 1, 2, 256>}, {transform_indices = @transform_4, window_bounds = array<i64: 1, 42, 256>}]} {
    %c0 = arith.constant 0 : index
    %c0_0 = arith.constant 0 : index
    %c0_1 = arith.constant 0 : index
    %0 = vector.load %arg2[%c0, %c0_0, %c0_1] : memref<1x4x256xf32, #tpu.memory_space<vmem>>, vector<1x4x256xf32>
    %1 = vector.shape_cast %0 : vector<1x4x256xf32> to vector<4x256xf32>
    %c0_2 = arith.constant 0 : index
    %c0_3 = arith.constant 0 : index
    %c0_4 = arith.constant 0 : index
    %2 = vector.load %arg3[%c0_2, %c0_3, %c0_4] : memref<1x4x256xf32, #tpu.memory_space<vmem>>, vector<1x4x256xf32>
    %3 = vector.shape_cast %2 : vector<1x4x256xf32> to vector<4x256xf32>
    %c0_5 = arith.constant 0 : index
    %c0_6 = arith.constant 0 : index
    %c0_7 = arith.constant 0 : index
    %4 = vector.load %arg4[%c0_5, %c0_6, %c0_7] : memref<1x32x1xf32, #tpu.memory_space<vmem>>, vector<1x32x1xf32>
    %5 = vector.shape_cast %4 : vector<1x32x1xf32> to vector<32x1xf32>
    %6 = vector.shape_cast %5 : vector<32x1xf32> to vector<32x1xf32>
    %7 = vector.broadcast %6 : vector<32x1xf32> to vector<32x256xf32>
    %c0_8 = arith.constant 0 : index
    %c0_9 = arith.constant 0 : index
    %c0_10 = arith.constant 0 : index
    %8 = vector.load %arg5[%c0_8, %c0_9, %c0_10] : memref<1x2x256xf32, #tpu.memory_space<vmem>>, vector<1x2x256xf32>
    %9 = vector.shape_cast %8 : vector<1x2x256xf32> to vector<2x256xf32>
    %10 = tpu.concatenate %1, %3, %7, %9 in 0 : vector<4x256xf32>, vector<4x256xf32>, vector<32x256xf32>, vector<2x256xf32> -> vector<42x256xf32>
    %c0_11 = arith.constant 0 : index
    %c0_12 = arith.constant 0 : index
    %c0_13 = arith.constant 0 : index
    %11 = vector.load %arg6[%c0_11, %c0_12, %c0_13] : memref<1x42x256xf32, #tpu.memory_space<vmem>>, vector<1x42x256xf32>
    %12 = vector.shape_cast %11 : vector<1x42x256xf32> to vector<42x256xf32>
    %13 = vector.shape_cast %10 : vector<42x256xf32> to vector<1x42x256xf32>
    tpu.vector_store %arg6[%c0_11, %c0_12, %c0_13], %13 {strides = array<i32>} : memref<1x42x256xf32, #tpu.memory_space<vmem>>, vector<1x42x256xf32>,
    return
  }
  func.func @transform_0(%arg0: i32, %arg1: i32) -> (i32, i32, i32) {
    %c0_i32 = arith.constant 0 : i32
    %c0_i32_0 = arith.constant 0 : i32
    return %arg0, %c0_i32, %arg1 : i32, i32, i32
  }
  func.func @transform_1(%arg0: i32, %arg1: i32) -> (i32, i32, i32) {
    %c0_i32 = arith.constant 0 : i32
    %c0_i32_0 = arith.constant 0 : i32
    return %arg0, %c0_i32, %arg1 : i32, i32, i32
  }
  func.func @transform_2(%arg0: i32, %arg1: i32) -> (i32, i32, i32) {
    %c0_i32 = arith.constant 0 : i32
    %c0_i32_0 = arith.constant 0 : i32
    %c0_i32_1 = arith.constant 0 : i32
    return %arg0, %c0_i32, %c0_i32_0 : i32, i32, i32
  }
  func.func @transform_3(%arg0: i32, %arg1: i32) -> (i32, i32, i32) {
    %c0_i32 = arith.constant 0 : i32
    %c0_i32_0 = arith.constant 0 : i32
    %c0_i32_1 = arith.constant 0 : i32
    return %arg0, %c0_i32, %c0_i32_0 : i32, i32, i32
  }
  func.func @transform_4(%arg0: i32, %arg1: i32) -> (i32, i32, i32) {
    %c0_i32 = arith.constant 0 : i32
    %c0_i32_0 = arith.constant 0 : i32
    return %arg0, %c0_i32, %arg1 : i32, i32, i32
  }
}

</mosaic_0001>

<llo_original>
// kernel: tpu_custom_call.1
$region0: #{tpu_custom_call.1}
  #allocation0 [shape = 'u32[]', space=smem, size = 0x4, offset = 0x4, fixed_abs, tag = 'smem constant byte address 0x4 - core index']
  #allocation1 [shape = 'u32[72,128]{1,0:T(1,128)}', space=vmem, size = 0x9000, scoped, tag = 'internal scratch']
  %s0 = inlined_call_operand.vmem [shape: f32[2,4,256], index: 0, kind: input, shape index: {}]
  %s1 = inlined_call_operand.vmem [shape: f32[2,4,256], index: 1, kind: input, shape index: {}]
  %s2 = inlined_call_operand.vmem [shape: f32[2,32,1], index: 2, kind: input, shape index: {}]
  %s3 = inlined_call_operand.vmem [shape: f32[2,2,256], index: 3, kind: input, shape index: {}]
  %s4 = inlined_call_operand.vmem [shape: f32[2,42,256], index: 4, kind: output, shape index: {}]
  %s5 = sld [smem:[#allocation0]]
  $region49: #{tpu_custom_call.1} parent=0
    _
  %s7 = ssub.s32 1, %s5
  %s8 = scalar_select 0, %s7, %s5
  loop: start=0, step=1, limit=4
  $region2: #{tpu_custom_call.1} parent=0 // loop_pre_header
    _
  $region3: #{tpu_custom_call.1} parent=0 // loop_header
    %s10 = sphi 0, %s14
    %p11 = scmp.ge.s32.totalorder %s10, 4
    %s17 = sphi 0, %s29
    %s18 = sphi 0, %s25
    %s19 = sphi 0, %s17
    %s20 = sphi 0, %s18
    %s21 = sphi 0, %s19
    %s22 = sphi 0, %s20
    %s34 = sphi 0, %s36
    %s37 = sphi 0, %s34
    %s38 = sphi 0, %s37
    %s54 = sphi 0, %s38
    %s62 = sphi 0, %s64
    %s65 = sphi 0, %s62
    %s66 = sphi 0, %s65
    %s82 = sphi 0, %s66
    %s88 = sphi 0, %s90
    %s91 = sphi 0, %s88
    %s92 = sphi 0, %s91
    %s108 = sphi 0, %s92
    %s114 = sphi 0, %s116
    %s117 = sphi 0, %s114
    %s118 = sphi 0, %s117
    %s134 = sphi 0, %s118
    %s142 = sphi 0, %s144
    %s145 = sphi 0, %s142
    %s146 = sphi 0, %s145
    %s162 = sphi 0, %s146
  $region4: #{tpu_custom_call.1} parent=0 // loop_header_branch
    %13 = sbr.rel (%p11) target = $region8
  $region5: #{tpu_custom_call.1} parent=0 // loop_body
    %s15 = ssub.s32 %s10, 1
    %s16 = ssub.s32 %s10, 2
    %s23 = sadd.s32 1, %s18
    %p24 = scmp.ge.s32.totalorder %s23, 1
    %s25 = scalar_select %p24, 0, %s23
    %s26 = sadd.s32 1, %s17
    %s27 = scalar_select %p24, %s26, %s17
    %p28 = scmp.ge.s32.totalorder %s27, 2
    %s29 = scalar_select %p28, 0, %s27
    %s30 = ssub.s32 %s17, %s29
    %s31 = ssub.s32 %s18, %s25
    %s32 = sor.u32 %s30, %s31
    %p33 = scmp.eq.s32.totalorder %s32, 0
    %s35 = sadd.s32 %s34, 1
    %s36 = scalar_select %p33, %s34, %s35
    %p39 = pneg %p33
    %p40 = scmp.eq.s32.totalorder %s10, 1
    %p41 = por %p39, %p40
    %p42 = scmp.ne.s32.totalorder %s34, %s37
    %p43 = scmp.eq.s32.totalorder %s10, 0
    %p44 = por %p42, %p43
    %p45 = scmp.ne.s32.totalorder %s34, %s37
    %p46 = scmp.eq.s32.totalorder %s15, 1
    %p47 = por %p45, %p46
    %p48 = scmp.ne.s32.totalorder %s37, %s38
    %p49 = scmp.eq.s32.totalorder %s15, 0
    %p50 = por %p48, %p49
    %p51 = scmp.ne.s32.totalorder %s37, %s38
    %p52 = scmp.eq.s32.totalorder %s16, 1
    %p53 = por %p51, %p52
    %p55 = scmp.ne.s32.totalorder %s38, %s54
    %p56 = scmp.eq.s32.totalorder %s16, 0
    %p57 = por %p55, %p56
    %s58 = ssub.s32 %s17, %s29
    %s59 = ssub.s32 %s18, %s25
    %s60 = sor.u32 %s58, %s59
    %p61 = scmp.eq.s32.totalorder %s60, 0
    %s63 = sadd.s32 %s62, 1
    %s64 = scalar_select %p61, %s62, %s63
    %p67 = pneg %p61
    %p68 = scmp.eq.s32.totalorder %s10, 1
    %p69 = por %p67, %p68
    %p70 = scmp.ne.s32.totalorder %s62, %s65
    %p71 = scmp.eq.s32.totalorder %s10, 0
    %p72 = por %p70, %p71
    %p73 = scmp.ne.s32.totalorder %s62, %s65
    %p74 = scmp.eq.s32.totalorder %s15, 1
    %p75 = por %p73, %p74
    %p76 = scmp.ne.s32.totalorder %s65, %s66
    %p77 = scmp.eq.s32.totalorder %s15, 0
    %p78 = por %p76, %p77
    %p79 = scmp.ne.s32.totalorder %s65, %s66
    %p80 = scmp.eq.s32.totalorder %s16, 1
    %p81 = por %p79, %p80
    %p83 = scmp.ne.s32.totalorder %s66, %s82
    %p84 = scmp.eq.s32.totalorder %s16, 0
    %p85 = por %p83, %p84
    %s86 = ssub.s32 %s17, %s29
    %p87 = scmp.eq.s32.totalorder %s86, 0
    %s89 = sadd.s32 %s88, 1
    %s90 = scalar_select %p87, %s88, %s89
    %p93 = pneg %p87
    %p94 = scmp.eq.s32.totalorder %s10, 1
    %p95 = por %p93, %p94
    %p96 = scmp.ne.s32.totalorder %s88, %s91
    %p97 = scmp.eq.s32.totalorder %s10, 0
    %p98 = por %p96, %p97
    %p99 = scmp.ne.s32.totalorder %s88, %s91
    %p100 = scmp.eq.s32.totalorder %s15, 1
    %p101 = por %p99, %p100
    %p102 = scmp.ne.s32.totalorder %s91, %s92
    %p103 = scmp.eq.s32.totalorder %s15, 0
    %p104 = por %p102, %p103
    %p105 = scmp.ne.s32.totalorder %s91, %s92
    %p106 = scmp.eq.s32.totalorder %s16, 1
    %p107 = por %p105, %p106
    %p109 = scmp.ne.s32.totalorder %s92, %s108
    %p110 = scmp.eq.s32.totalorder %s16, 0
    %p111 = por %p109, %p110
    %s112 = ssub.s32 %s17, %s29
    %p113 = scmp.eq.s32.totalorder %s112, 0
    %s115 = sadd.s32 %s114, 1
    %s116 = scalar_select %p113, %s114, %s115
    %p119 = pneg %p113
    %p120 = scmp.eq.s32.totalorder %s10, 1
    %p121 = por %p119, %p120
    %p122 = scmp.ne.s32.totalorder %s114, %s117
    %p123 = scmp.eq.s32.totalorder %s10, 0
    %p124 = por %p122, %p123
    %p125 = scmp.ne.s32.totalorder %s114, %s117
    %p126 = scmp.eq.s32.totalorder %s15, 1
    %p127 = por %p125, %p126
    %p128 = scmp.ne.s32.totalorder %s117, %s118
    %p129 = scmp.eq.s32.totalorder %s15, 0
    %p130 = por %p128, %p129
    %p131 = scmp.ne.s32.totalorder %s117, %s118
    %p132 = scmp.eq.s32.totalorder %s16, 1
    %p133 = por %p131, %p132
    %p135 = scmp.ne.s32.totalorder %s118, %s134
    %p136 = scmp.eq.s32.totalorder %s16, 0
    %p137 = por %p135, %p136
    %s138 = ssub.s32 %s17, %s29
    %s139 = ssub.s32 %s18, %s25
    %s140 = sor.u32 %s138, %s139
    %p141 = scmp.eq.s32.totalorder %s140, 0
    %s143 = sadd.s32 %s142, 1
    %s144 = scalar_select %p141, %s142, %s143
    %p147 = pneg %p141
    %p148 = scmp.eq.s32.totalorder %s10, 1
    %p149 = por %p147, %p148
    %p150 = scmp.ne.s32.totalorder %s142, %s145
    %p151 = scmp.eq.s32.totalorder %s10, 0
    %p152 = por %p150, %p151
    %p153 = scmp.ne.s32.totalorder %s142, %s145
    %p154 = scmp.eq.s32.totalorder %s15, 1
    %p155 = por %p153, %p154
    %p156 = scmp.ne.s32.totalorder %s145, %s146
    %p157 = scmp.eq.s32.totalorder %s15, 0
    %p158 = por %p156, %p157
    %p159 = scmp.ne.s32.totalorder %s145, %s146
    %p160 = scmp.eq.s32.totalorder %s16, 1
    %p161 = por %p159, %p160
    %p163 = scmp.ne.s32.totalorder %s146, %s162
    %p164 = scmp.eq.s32.totalorder %s16, 0
    %p165 = por %p163, %p164
    %p166 = scmp.le.s32.totalorder 1, %s10
    %p167 = scmp.lt.s32.totalorder %s10, 3
    %p168 = pnand %p166, %p167
    %p169 = pneg %p168
    // Predicated region
    $region9: #{tpu_custom_call.1} parent=5 // pred_check
      _
    $region10: #{tpu_custom_call.1} parent=5 // pred_check_branch
      %171 = sbr.rel (%p168) target = $region12
    $region11: #{tpu_custom_call.1} parent=5 // pred_region
      %s172 = ssub.s32 %s10, 1
    $region12: #{tpu_custom_call.1} parent=5 // pred_fallthru
      _
    %p173 = scmp.lt.s32.totalorder %s10, 2
    // Predicated region
    $region13: #{tpu_custom_call.1} parent=5 // pred_check
      %p174 = pneg %p173
    $region14: #{tpu_custom_call.1} parent=5 // pred_check_branch
      %176 = sbr.rel (%p174) target = $region16
    $region15: #{tpu_custom_call.1} parent=5 // pred_region
      // Predicated region
      $region17: #{tpu_custom_call.1} parent=15 // pred_check
        %p177 = pneg %p44
      $region18: #{tpu_custom_call.1} parent=15 // pred_check_branch
        %179 = sbr.rel (%p177) target = $region20
      $region19: #{tpu_custom_call.1} parent=15 // pred_region
        %s180 = smul.u32 2, %s18
        %p181 = scmp.lt.s32.totalorder %s17, 1
        %s182 = scalar_select %p181, %s17, 1
        %p183 = scmp.lt.s32.totalorder %s180, 1
        %s184 = scalar_select %p183, %s180, 1
        %s185 = smul.addr %s182, 2
        %s186 = sadd.s32 %s184, %s185
        %s187 = smul.addr %s186, 4
        %s188 = scalar_lea.vmem %s0, %s187
        %s189 = smul.u32 2, %s18
      $region20: #{tpu_custom_call.1} parent=15 // pred_fallthru
        _
      // Predicated region
      $region21: #{tpu_custom_call.1} parent=15 // pred_check
        %p190 = pneg %p72
      $region22: #{tpu_custom_call.1} parent=15 // pred_check_branch
        %192 = sbr.rel (%p190) target = $region24
      $region23: #{tpu_custom_call.1} parent=15 // pred_region
        %s193 = smul.u32 2, %s18
        %p194 = scmp.lt.s32.totalorder %s17, 1
        %s195 = scalar_select %p194, %s17, 1
        %p196 = scmp.lt.s32.totalorder %s193, 1
        %s197 = scalar_select %p196, %s193, 1
        %s198 = smul.addr %s195, 2
        %s199 = sadd.s32 %s197, %s198
        %s200 = smul.addr %s199, 4
        %s201 = scalar_lea.vmem %s1, %s200
        %s202 = smul.u32 2, %s18
      $region24: #{tpu_custom_call.1} parent=15 // pred_fallthru
        _
      // Predicated region
      $region25: #{tpu_custom_call.1} parent=15 // pred_check
        %p203 = pneg %p98
      $region26: #{tpu_custom_call.1} parent=15 // pred_check_branch
        %205 = sbr.rel (%p203) target = $region28
      $region27: #{tpu_custom_call.1} parent=15 // pred_region
        %p206 = scmp.lt.s32.totalorder %s17, 1
        %s207 = scalar_select %p206, %s17, 1
        %s208 = smul.addr %s207, 4
        %s209 = smul.addr %s208, 8
        %s210 = scalar_lea.vmem %s2, %s209
      $region28: #{tpu_custom_call.1} parent=15 // pred_fallthru
        _
      // Predicated region
      $region29: #{tpu_custom_call.1} parent=15 // pred_check
        %p211 = pneg %p124
      $region30: #{tpu_custom_call.1} parent=15 // pred_check_branch
        %213 = sbr.rel (%p211) target = $region32
      $region31: #{tpu_custom_call.1} parent=15 // pred_region
        %p214 = scmp.lt.s32.totalorder %s17, 1
        %s215 = scalar_select %p214, %s17, 1
        %s216 = smul.addr %s215, 2
        %s217 = smul.addr %s216, 2
        %s218 = scalar_lea.vmem %s3, %s217
      $region32: #{tpu_custom_call.1} parent=15 // pred_fallthru
        _
    $region16: #{tpu_custom_call.1} parent=5 // pred_fallthru
      _
    %p219 = scmp.le.s32.totalorder 1, %s10
    %p220 = scmp.lt.s32.totalorder %s10, 3
    %p221 = pnand %p219, %p220
    %p222 = pneg %p221
    // Predicated region
    $region33: #{tpu_custom_call.1} parent=5 // pred_check
      _
    $region34: #{tpu_custom_call.1} parent=5 // pred_check_branch
      %224 = sbr.rel (%p221) target = $region36
    $region35: #{tpu_custom_call.1} parent=5 // pred_region
      %s225 = ssub.s32 %s10, 1
      %s226 = smul.u32 2, %s20
      %p227 = scmp.lt.s32.totalorder %s19, 1
      %s228 = scalar_select %p227, %s19, 1
      %p229 = scmp.lt.s32.totalorder %s226, 1
      %s230 = scalar_select %p229, %s226, 1
      %s231 = smul.addr %s228, 2
      %s232 = sadd.s32 %s230, %s231
      %s233 = smul.addr %s232, 4
      %s234 = scalar_lea.vmem %s0, %s233
      %p235 = pneg %p50
      %p236 = pneg %p47
      %s237 = smul.u32 2, %s20
      %p238 = scmp.lt.s32.totalorder %s19, 1
      %s239 = scalar_select %p238, %s19, 1
      %p240 = scmp.lt.s32.totalorder %s237, 1
      %s241 = scalar_select %p240, %s237, 1
      %s242 = smul.addr %s239, 2
      %s243 = sadd.s32 %s241, %s242
      %s244 = smul.addr %s243, 4
      %s245 = scalar_lea.vmem %s1, %s244
      %p246 = pneg %p78
      %p247 = pneg %p75
      %p248 = scmp.lt.s32.totalorder %s19, 1
      %s249 = scalar_select %p248, %s19, 1
      %s250 = smul.addr %s249, 4
      %s251 = smul.addr %s250, 8
      %s252 = scalar_lea.vmem %s2, %s251
      %p253 = pneg %p104
      %p254 = pneg %p101
      %p255 = scmp.lt.s32.totalorder %s19, 1
      %s256 = scalar_select %p255, %s19, 1
      %s257 = smul.addr %s256, 2
      %s258 = smul.addr %s257, 2
      %s259 = scalar_lea.vmem %s3, %s258
      %p260 = pneg %p130
      %p261 = pneg %p127
      %p262 = pneg %p158
      %p263 = pneg %p155
      %s264 = smul.u32 2, %s20
      %p265 = scmp.lt.s32.totalorder %s19, 1
      %s266 = scalar_select %p265, %s19, 1
      %p267 = scmp.lt.s32.totalorder %s264, 1
      %s268 = scalar_select %p267, %s264, 1
      %s269 = smul.addr %s266, 12
      %s270 = sadd.s32 %s268, %s269
      %s271 = smul.addr %s270, 8
      %s272 = scalar_lea.vmem %s4, %s271
      %s273 = smul.u32 2, %s20
      %p274 = scmp.lt.s32.totalorder %s19, 1
      %s275 = scalar_select %p274, %s19, 1
      %p276 = scmp.lt.s32.totalorder %s273, 1
      %s277 = scalar_select %p276, %s273, 1
      %s278 = smul.addr %s275, 2
      %s279 = sadd.s32 %s277, %s278
      %s280 = smul.addr %s279, 4
      %s281 = scalar_lea.vmem %s0, %s280
      %s282 = smul.u32 2, %s20
      %s283 = smul.u32 2, %s20
      %p284 = scmp.lt.s32.totalorder %s19, 1
      %s285 = scalar_select %p284, %s19, 1
      %p286 = scmp.lt.s32.totalorder %s283, 1
      %s287 = scalar_select %p286, %s283, 1
      %s288 = smul.addr %s285, 2
      %s289 = sadd.s32 %s287, %s288
      %s290 = smul.addr %s289, 4
      %s291 = scalar_lea.vmem %s1, %s290
      %s292 = smul.u32 2, %s20
      %p293 = scmp.lt.s32.totalorder %s19, 1
      %s294 = scalar_select %p293, %s19, 1
      %s295 = smul.addr %s294, 4
      %s296 = smul.addr %s295, 8
      %s297 = scalar_lea.vmem %s2, %s296
      %p298 = scmp.lt.s32.totalorder %s19, 1
      %s299 = scalar_select %p298, %s19, 1
      %s300 = smul.addr %s299, 2
      %s301 = smul.addr %s300, 2
      %s302 = scalar_lea.vmem %s3, %s301
      %s303 = smul.u32 2, %s20
      %p304 = scmp.lt.s32.totalorder %s19, 1
      %s305 = scalar_select %p304, %s19, 1
      %p306 = scmp.lt.s32.totalorder %s303, 1
      %s307 = scalar_select %p306, %s303, 1
      %s308 = smul.addr %s305, 12
      %s309 = sadd.s32 %s307, %s308
      %s310 = smul.addr %s309, 8
      %s311 = scalar_lea.vmem %s4, %s310
      %s312 = smul.u32 2, %s20
      %v313 = vld [vmem:[%s281] sm:$0xff]
      %v314 = vld [vmem:[%s291] sm:$0xff]
      %v315 = vld [vmem:[%s297] sm:$0xff]
      %v316 = vld [vmem:[%s297 + $0x8] sm:$0xff]
      %v317 = vld [vmem:[%s297 + $0x10] sm:$0xff]
      %v318 = vld [vmem:[%s297 + $0x18] sm:$0xff]
      %320 = vset.pattern.permute.xlu0 0
      %321 = vperm.xlu0 %320, %v315
      %v322 = vpop.permute.xlu0 %321
      %325 = vset.pattern.permute.xlu0 0
      %326 = vperm.xlu0 %325, %v316
      %v327 = vpop.permute.xlu0 %326
      %330 = vset.pattern.permute.xlu0 0
      %331 = vperm.xlu0 %330, %v317
      %v332 = vpop.permute.xlu0 %331
      %335 = vset.pattern.permute.xlu0 0
      %336 = vperm.xlu0 %335, %v318
      %v337 = vpop.permute.xlu0 %336
      %v339 = vld [vmem:[%s302] sm:$0xf]
      %341 = vst [vmem:[#allocation1] ss:$2 sm:$0xff] %v313
      %v342 = vld.sshfl [vmem:[#allocation1] sm:$0xff pattern:$0x75316420]
      %v343 = vld.sshfl [vmem:[#allocation1 + $0x8] sm:$0xff pattern:$0x75316420]
      %s347 = scalar_lea.vmem [#allocation1], 1
      %348 = vst [vmem:[%s347] ss:$2 sm:$0xff] %v314
      %v349 = vld.sshfl [vmem:[#allocation1] sm:$0xff pattern:$0x75316420]
      %v350 = vld.sshfl [vmem:[#allocation1 + $0x8] sm:$0xff pattern:$0x75316420]
      %354 = vst [vmem:[#allocation1] ss:$4 sm:$0xff] %v339
      %v355 = vld.sshfl [vmem:[#allocation1] sm:$0xff pattern:$0x73625140]
      %v356 = vld.sshfl [vmem:[#allocation1 + $0x8] sm:$0xff pattern:$0x73625140]
      %vm359 = vcmask 1043456
      %v360 = vsel %vm359, %v342, %v349
      %v361 = vsel %vm359, %v343, %v350
      %362 = vst [vmem:[%s311] sm:$0xff] %v360
      %363 = vst [vmem:[%s311 + $0x8] sm:$0xff] %v361
      %364 = vst [vmem:[%s311 + $0x10] sm:$0xff] %v322
      %365 = vst [vmem:[%s311 + $0x18] sm:$0xff] %v322
      %366 = vst [vmem:[%s311 + $0x20] sm:$0xff] %v327
      %367 = vst [vmem:[%s311 + $0x28] sm:$0xff] %v327
      %368 = vst [vmem:[%s311 + $0x30] sm:$0xff] %v332
      %369 = vst [vmem:[%s311 + $0x38] sm:$0xff] %v332
      %370 = vst [vmem:[%s311 + $0x40] sm:$0xff] %v337
      %371 = vst [vmem:[%s311 + $0x48] sm:$0xff] %v337
      %372 = vst [vmem:[%s311 + $0x50] sm:$0x3] %v355
      %373 = vst [vmem:[%s311 + $0x58] sm:$0x3] %v356
      %s374 = smul.u32 2, %s20
      %p375 = scmp.lt.s32.totalorder %s19, 1
      %s376 = scalar_select %p375, %s19, 1
      %p377 = scmp.lt.s32.totalorder %s374, 1
      %s378 = scalar_select %p377, %s374, 1
      %s379 = smul.addr %s376, 12
      %s380 = sadd.s32 %s378, %s379
      %s381 = smul.addr %s380, 8
      %s382 = scalar_lea.vmem %s4, %s381
      // Predicated region
      $region37: #{tpu_custom_call.1} parent=35 // pred_check
        %p383 = pneg %p155
      $region38: #{tpu_custom_call.1} parent=35 // pred_check_branch
        %385 = sbr.rel (%p383) target = $region40
      $region39: #{tpu_custom_call.1} parent=35 // pred_region
        %s386 = smul.u32 2, %s20
      $region40: #{tpu_custom_call.1} parent=35 // pred_fallthru
        _
    $region36: #{tpu_custom_call.1} parent=5 // pred_fallthru
      _
    %p387 = scmp.le.s32.totalorder 2, %s10
    // Predicated region
    $region41: #{tpu_custom_call.1} parent=5 // pred_check
      %p388 = pneg %p387
    $region42: #{tpu_custom_call.1} parent=5 // pred_check_branch
      %390 = sbr.rel (%p388) target = $region44
    $region43: #{tpu_custom_call.1} parent=5 // pred_region
      %s391 = ssub.s32 %s10, 2
      // Predicated region
      $region45: #{tpu_custom_call.1} parent=43 // pred_check
        %p392 = pneg %p161
      $region46: #{tpu_custom_call.1} parent=43 // pred_check_branch
        %394 = sbr.rel (%p392) target = $region48
      $region47: #{tpu_custom_call.1} parent=43 // pred_region
        %s395 = smul.u32 2, %s22
        %p396 = scmp.lt.s32.totalorder %s21, 1
        %s397 = scalar_select %p396, %s21, 1
        %p398 = scmp.lt.s32.totalorder %s395, 1
        %s399 = scalar_select %p398, %s395, 1
        %s400 = smul.addr %s397, 12
        %s401 = sadd.s32 %s399, %s400
        %s402 = smul.addr %s401, 8
        %s403 = scalar_lea.vmem %s4, %s402
      $region48: #{tpu_custom_call.1} parent=43 // pred_fallthru
        _
    $region44: #{tpu_custom_call.1} parent=5 // pred_fallthru
      _
  $region6: #{tpu_custom_call.1} parent=0 // loop_footer
    %s14 = sadd.s32 1, %s10
  $region7: #{tpu_custom_call.1} parent=0 // loop_footer_branch
    %9 = sbr.rel target = $region3
  $region8: #{tpu_custom_call.1} parent=0 // loop_exit
    _

</llo_original>
